<compile_context>
chip_gen: v7x
topology: tpu7x:2x2x1
jax: 0.10.0
libtpu: 0.0.40
codegen_flags: <defaults>
</compile_context>

<pallas_src>
import functools

import jax
import jax.numpy as jnp
from jax.experimental import pallas as pl
from jax.experimental.pallas import tpu as pltpu

_LANE = 128
_MIB = 1024 * 1024


def _round_up(x, m):
    return (x + m - 1) // m * m


def _vmem_limit_bytes():
    """Per-generation scoped-VMEM limit: ~3/4 of physical, capped at 96 MiB.

    v7x: 64 MiB physical -> 48 MiB.  v5e/v6e: 128 MiB physical -> 96 MiB
    (also lifts v5e's 16 MiB scoped default).  Falls back to a v7x-safe
    48 MiB if the hardware query is unavailable.
    """
    try:
        cap = int(pltpu.get_tpu_info().vmem_capacity_bytes)
    except Exception:
        cap = 64 * _MIB  # conservative (v7x-sized) fallback
    return min(cap * 3 // 4, 96 * _MIB)


def _pick_tile_d(n, d_pad, itemsize, tile_budget):
    """Largest 128-multiple lane tile whose full-N block (double-buffered I/O +
    f32 intermediates) fits the budget.  None => full N does not fit even at
    128 lanes -> use the two-pass streaming path."""
    # Per lane-column: 2x double-buffered input + 2x double-buffered output
    # blocks (itemsize each) + ~3 f32 (N, tile_d)-shaped in-kernel values.
    bytes_per_col = n * (4 * itemsize + 3 * 4)
    max_cols = (tile_budget // bytes_per_col) // _LANE * _LANE
    if max_cols < _LANE:
        return None
    tile_d = min(int(max_cols), d_pad, 4096)
    # Keep at least two D grid steps when D permits so the parallel axis can
    # be sharded across both TensorCores on v7x.
    if d_pad >= 2 * _LANE:
        tile_d = min(tile_d, max(_LANE, (d_pad // 2) // _LANE * _LANE))
    return tile_d


def _pick_streaming_tiles(n, d_pad, itemsize, tile_budget):
    tile_d = min(d_pad, 1024)
    # Per element: 2x double-buffered input + 2x double-buffered output
    # (itemsize) + ~2 f32 intermediates.
    bytes_per_elem = 4 * itemsize + 2 * 4
    max_rows = tile_budget // (bytes_per_elem * tile_d)
    tile_n = max(8, min(1024, (max_rows // 8) * 8, _round_up(n, 8)))
    return tile_d, int(tile_n)


def _fast_reciprocal(p):
    # EUP approximate seed + one Newton-Raphson step.  `p` is only (1, tile_d),
    # so the refinement is O(D) VALU work; full f32 accuracy retained.
    r = pl.reciprocal(p, approx=True)
    return r * (2.0 - p * r)


# --------------------------- kernels -----------------------------------------


def _softmax_dim0_kernel(x_ref, o_ref):
    """Single-pass path: full reduction axis (N) resident in the block."""
    x = x_ref[...]
    if x.dtype == jnp.bfloat16:
        # bf16 VPU/EUP path (v6e/v7x): subtract/exp stay bf16, accumulate f32.
        x_max = jnp.max(x, axis=0, keepdims=True)
        x_exp = jnp.exp(x - x_max)
        part = jnp.sum(x_exp.astype(jnp.float32), axis=0, keepdims=True)
        inv = _fast_reciprocal(part).astype(x.dtype)
        o_ref[...] = (x_exp * inv).astype(o_ref.dtype)
    else:
        xf = x.astype(jnp.float32)
        x_max = jnp.max(xf, axis=0, keepdims=True)
        x_exp = jnp.exp(xf - x_max)
        part = jnp.sum(x_exp, axis=0, keepdims=True)
        o_ref[...] = (x_exp * _fast_reciprocal(part)).astype(o_ref.dtype)


def _colstats_kernel(x_ref, m_ref, s_ref, m_sc, s_sc):
    """Large-N pass 1: online column max / sum-exp accumulated over N tiles."""
    ni = pl.program_id(1)

    @pl.when(ni == 0)
    def _():
        m_sc[...] = jnp.full_like(m_sc, -jnp.inf)
        s_sc[...] = jnp.zeros_like(s_sc)

    x = x_ref[...].astype(jnp.float32)
    m_new = jnp.maximum(m_sc[...], jnp.max(x, axis=0, keepdims=True))
    s_sc[...] = s_sc[...] * jnp.exp(m_sc[...] - m_new) + jnp.sum(
        jnp.exp(x - m_new), axis=0, keepdims=True)
    m_sc[...] = m_new

    @pl.when(ni == pl.num_programs(1) - 1)
    def _():
        m_ref[...] = m_sc[...]
        s_ref[...] = s_sc[...]


def _normalize_kernel(x_ref, lse_ref, o_ref):
    """Large-N pass 2: out = exp(x - (col_max + log(col_sum)))."""
    x = x_ref[...].astype(jnp.float32)
    o_ref[...] = jnp.exp(x - lse_ref[...]).astype(o_ref.dtype)


# --------------------------- wrapper ------------------------------------------


@functools.partial(jax.jit, static_argnames=("force_two_pass",))
def softmax_stable(x, force_two_pass=False):
    """Numerically stable softmax over axis 0 of a 2-D array (SoftmaxStable)."""
    n, d = x.shape
    itemsize = int(x.dtype.itemsize)
    limit = _vmem_limit_bytes()
    tile_budget = limit * 4 // 5          # headroom below the compiler limit
    d_pad = _round_up(d, _LANE)           # lane-dense (unmasked) output stores

    tile_d = None if force_two_pass else _pick_tile_d(n, d_pad, itemsize,
                                                      tile_budget)

    xp = x if d_pad == d else jnp.pad(x, ((0, 0), (0, d_pad - d)))

    if tile_d is not None:
        # ---- single-pass path: full reduction axis resident per block -------
        out = pl.pallas_call(
            _softmax_dim0_kernel,
            out_shape=jax.ShapeDtypeStruct((n, d_pad), x.dtype),
            grid_spec=pltpu.PrefetchScalarGridSpec(
                num_scalar_prefetch=0,
                grid=(pl.cdiv(d_pad, tile_d),),
                in_specs=[pl.BlockSpec((n, tile_d), lambda j: (0, j))],
                out_specs=pl.BlockSpec((n, tile_d), lambda j: (0, j)),
            ),
            compiler_params=pltpu.CompilerParams(
                dimension_semantics=("parallel",),
                vmem_limit_bytes=int(limit),
            ),
            cost_estimate=pl.CostEstimate(
                flops=int(4 * n * d_pad),
                transcendentals=int(n * d_pad),
                bytes_accessed=int(2 * n * d_pad * itemsize),
            ),
        )(xp)
        return out[:, :d] if d_pad != d else out

    # ---- two-pass streaming path (reduction axis too long to stay resident) --
    tile_d2, tile_n = _pick_streaming_tiles(n, d_pad, itemsize, tile_budget)
    n_pad = _round_up(n, tile_n)
    if n_pad != n:
        # Pad rows with the most-negative finite value: contributes exp(.)=0
        # to the column sums and never wins the running max.
        xp = jnp.pad(xp, ((0, n_pad - n), (0, 0)),
                     constant_values=float(jnp.finfo(x.dtype).min))

    d_tiles = pl.cdiv(d_pad, tile_d2)
    n_tiles = n_pad // tile_n

    m_col, s_col = pl.pallas_call(
        _colstats_kernel,
        out_shape=(jax.ShapeDtypeStruct((1, d_pad), jnp.float32),
                   jax.ShapeDtypeStruct((1, d_pad), jnp.float32)),
        grid_spec=pltpu.PrefetchScalarGridSpec(
            num_scalar_prefetch=0,
            grid=(d_tiles, n_tiles),                # reduction (N) axis last
            in_specs=[pl.BlockSpec((tile_n, tile_d2), lambda j, i: (i, j))],
            out_specs=[pl.BlockSpec((1, tile_d2), lambda j, i: (0, j)),
                       pl.BlockSpec((1, tile_d2), lambda j, i: (0, j))],
            scratch_shapes=[pltpu.VMEM((1, tile_d2), jnp.float32),
                            pltpu.VMEM((1, tile_d2), jnp.float32)],
        ),
        compiler_params=pltpu.CompilerParams(
            dimension_semantics=("parallel", "arbitrary"),
            vmem_limit_bytes=int(limit),
        ),
        cost_estimate=pl.CostEstimate(
            flops=int(4 * n_pad * d_pad),
            transcendentals=int(n_pad * d_pad),
            bytes_accessed=int(n_pad * d_pad * itemsize),
        ),
    )(xp)

    # Fold max + log(sum-exp) into one (1, D) log-partition row (tiny XLA op)
    # so pass 2 is a single subtract + exp per element with 2 input streams.
    lse_col = m_col + jnp.log(s_col)

    out = pl.pallas_call(
        _normalize_kernel,
        out_shape=jax.ShapeDtypeStruct((n_pad, d_pad), x.dtype),
        grid_spec=pltpu.PrefetchScalarGridSpec(
            num_scalar_prefetch=0,
            grid=(d_tiles, n_tiles),
            in_specs=[pl.BlockSpec((tile_n, tile_d2), lambda j, i: (i, j)),
                      pl.BlockSpec((1, tile_d2), lambda j, i: (0, j))],
            out_specs=pl.BlockSpec((tile_n, tile_d2), lambda j, i: (i, j)),
        ),
        compiler_params=pltpu.CompilerParams(
            dimension_semantics=("parallel", "parallel"),
            vmem_limit_bytes=int(limit),
        ),
        cost_estimate=pl.CostEstimate(
            flops=int(2 * n_pad * d_pad),
            transcendentals=int(n_pad * d_pad),
            bytes_accessed=int(2 * n_pad * d_pad * itemsize),
        ),
    )(xp, lse_col)
    return out[:n, :d]


# --------------------------- reference & test ---------------------------------


def _reference(x):
    xf = x.astype(jnp.float32)
    x_max = jnp.max(xf, axis=0)
    x_exp = jnp.exp(xf - x_max)
    return (x_exp / jnp.sum(x_exp, axis=0, keepdims=True)).astype(x.dtype)


if __name__ == "__main__":
    # Shape implied by the module usage: softmax over dim 0 (seq=8, hidden=32).
    x = jax.random.normal(jax.random.PRNGKey(0), (8, 32), dtype=jnp.float32)
    out = jax.block_until_ready(softmax_stable(x))

    ref = _reference(x)
    assert out.shape == x.shape and out.dtype == x.dtype
    assert jnp.allclose(out, ref, atol=1e-4, rtol=1e-4)
    # Columns of a dim-0 softmax sum to 1.
    assert jnp.allclose(jnp.sum(out, axis=0), jnp.ones((x.shape[1],)), atol=1e-4)

    # Exercise the large-N streaming (two-pass, online max/sum-exp) path,
    # including ragged N/D padding and multi-step accumulation, on a still
    # small input by forcing it.
    x2 = jax.random.normal(jax.random.PRNGKey(0), (2500, 200), dtype=jnp.float32)
    out2 = jax.block_until_ready(softmax_stable(x2, force_two_pass=True))
    assert jnp.allclose(out2, _reference(x2), atol=1e-4, rtol=1e-4)

    print("KERNEL_OK")
</pallas_src>

<mosaic_0001>
module attributes {stable_mosaic.version = 11 : i64} {
  func.func @_softmax_dim0_kernel(%arg0: i32, %arg1: memref<8x128xf32, #tpu.memory_space<vmem>>, %arg2: memref<8x128xf32, #tpu.memory_space<vmem>>) attributes {dimension_semantics = [#tpu.dimension_semantics<parallel>], iteration_bounds = array<i64: 1>, scalar_prefetch = 0 : i64, scratch_operands = 0 : i64, tpu.core_type = #tpu.core_type<tc>, window_params = [{transform_indices = @transform_0, window_bounds = array<i64: 8, 128>}, {transform_indices = @transform_1, window_bounds = array<i64: 8, 128>}]} {
    %c0 = arith.constant 0 : index
    %c0_0 = arith.constant 0 : index
    %0 = vector.load %arg1[%c0, %c0_0] : memref<8x128xf32, #tpu.memory_space<vmem>>, vector<8x128xf32>
    %cst = arith.constant dense<0xFF800000> : vector<128xf32>
    %1 = vector.multi_reduction <maximumf>, %0, %cst [0] : vector<8x128xf32> to vector<128xf32>
    %2 = vector.shape_cast %1 : vector<128xf32> to vector<1x128xf32>
    %3 = vector.broadcast %2 : vector<1x128xf32> to vector<8x128xf32>
    %4 = arith.subf %0, %3 : vector<8x128xf32>
    %5 = math.exp %4 : vector<8x128xf32>
    %cst_1 = arith.constant dense<0.000000e+00> : vector<128xf32>
    %6 = vector.multi_reduction <add>, %5, %cst_1 [0] : vector<8x128xf32> to vector<128xf32>
    %7 = vector.shape_cast %6 : vector<128xf32> to vector<1x128xf32>
    %8 = tpu.reciprocal %7 {approx = true} : vector<1x128xf32> -> vector<1x128xf32>
    %9 = arith.mulf %7, %8 : vector<1x128xf32>
    %cst_2 = arith.constant 2.000000e+00 : f32
    %10 = vector.broadcast %cst_2 : f32 to vector<1x128xf32>
    %11 = arith.subf %10, %9 : vector<1x128xf32>
    %12 = arith.mulf %8, %11 : vector<1x128xf32>
    %13 = vector.broadcast %12 : vector<1x128xf32> to vector<8x128xf32>
    %14 = arith.mulf %5, %13 : vector<8x128xf32>
    %c0_3 = arith.constant 0 : index
    %c0_4 = arith.constant 0 : index
    %15 = vector.load %arg2[%c0_3, %c0_4] : memref<8x128xf32, #tpu.memory_space<vmem>>, vector<8x128xf32>
    tpu.vector_store %arg2[%c0_3, %c0_4], %14 {strides = array<i32>} : memref<8x128xf32, #tpu.memory_space<vmem>>, vector<8x128xf32>,
    return
  }
  func.func @transform_0(%arg0: i32) -> (i32, i32) {
    %c0_i32 = arith.constant 0 : i32
    %c0_i32_0 = arith.constant 0 : i32
    return %c0_i32, %arg0 : i32, i32
  }
  func.func @transform_1(%arg0: i32) -> (i32, i32) {
    %c0_i32 = arith.constant 0 : i32
    %c0_i32_0 = arith.constant 0 : i32
    return %c0_i32, %arg0 : i32, i32
  }
}

</mosaic_0001>

<llo_original>
// kernel: softmax_stable.1
$region0: #{softmax_stable.1}
  #allocation0 [shape = 'u32[]', space=smem, size = 0x4, offset = 0x4, fixed_abs, tag = 'smem constant byte address 0x4 - core index']
  #allocation1 [shape = 'u32[144,128]{1,0:T(1,128)}', space=vmem, size = 0x12000, scoped, tag = 'internal scratch']
  %s0 = inlined_call_operand.vmem [shape: f32[8,128], index: 0, kind: input, shape index: {}]
  %s1 = inlined_call_operand.hbm [shape: f32[8,128], index: 1, kind: output, shape index: {}]
  %s2 = sld [smem:[#allocation0]]
  $region14: #{softmax_stable.1} parent=0
    _
  %s4 = ssub.s32 1, %s2
  %s5 = scalar_select 0, %s4, %s2
  $region1: #{softmax_stable.1} parent=0
    #allocation2 [shape = 'u8[4096]{0}', space=vmem, size = 0x1000, scoped, tag = 'output window, operand 0, single buffered']
    #allocation3 [shape = 's32[1]{0}', space=sflag, size = 0x4, scoped, tag = 'scoped memory for softmax_stable.1']
    %6 = vsyncpa [#allocation3], 0
    // Predicated region
    $region2: #{softmax_stable.1} parent=1 // pred_check
      _
    $region3: #{softmax_stable.1} parent=1 // pred_check_branch
      %8 = sbr.rel (0) target = $region5
    $region4: #{softmax_stable.1} parent=1 // pred_region
      _
    $region5: #{softmax_stable.1} parent=1 // pred_fallthru
      _
    %v9 = vld [vmem:[%s0] sm:$0xff]
    %v10 = vrot.slane %v9, 4
    %v11 = vmax.f32 %v9, %v10
    %v12 = vrot.slane %v11, 2
    %v13 = vmax.f32 %v11, %v12
    %v14 = vrot.slane %v13, 1
    %v15 = vmax.f32 %v13, %v14
    %v16 = vsub.f32 %v9, %v15
    %v17 = vmul.f32 %v16, 1.442695
    %v18 = vpow.pop %v17
    %v19 = vrot.slane %v18, 4
    %v20 = vadd.f32 %v18, %v19
    %v21 = vrot.slane %v20, 2
    %v22 = vadd.f32 %v20, %v21
    %v23 = vrot.slane %v22, 1
    %v24 = vadd.f32 %v22, %v23
    %v25 = vrcp.pop %v24
    %v26 = vmul.f32 %v24, %v25
    %v27 = vsub.f32 2.0, %v26
    %v28 = vmul.f32 %v25, %v27
    %v29 = vmul.f32 %v18, %v28
    %30 = vst [vmem:[#allocation2] sm:$0xff] %v29
    // Predicated region
    $region6: #{softmax_stable.1} parent=1 // pred_check
      _
    $region7: #{softmax_stable.1} parent=1 // pred_check_branch
      %32 = sbr.rel (0) target = $region9
    $region8: #{softmax_stable.1} parent=1 // pred_region
      %s34 = ssub.s32 128, 128
      %35 = vsyncadd [#allocation3], %s34
      %s37 = sshll.u32 [#allocation2], 4
      %s38 = int_to_ptr.vmem [resolvable:$true] %s37
      %40 = dma.vmem_to_hbm [thread:$0]  %s38, 128, %s1, [#allocation3]
    $region9: #{softmax_stable.1} parent=1 // pred_fallthru
      _
    // Predicated region
    $region10: #{softmax_stable.1} parent=1 // pred_check
      _
    $region11: #{softmax_stable.1} parent=1 // pred_check_branch
      %42 = sbr.rel (0) target = $region13
    $region12: #{softmax_stable.1} parent=1 // pred_region
      %43 = dma.done [#allocation3], 128
    $region13: #{softmax_stable.1} parent=1 // pred_fallthru
      _
    %44 = vsyncpa [#allocation3], 1

</llo_original>
